<compile_context>
chip_gen: v7x
topology: tpu7x:2x2x1
jax: 0.10.0
libtpu: 0.0.40
codegen_flags: <defaults>
</compile_context>

<pallas_src>
import jax
import jax.numpy as jnp
from jax.experimental import pallas as pl
from jax.experimental.pallas import tpu as pltpu

# ---- deterministic GP hyper-parameters (synthetic, no checkpoint) -----------
SIGNAL_VAR = 1.3      # kernel signal variance sigma^2
LENGTHSCALE = 0.7     # RBF lengthscale l
NOISE_VAR = 1e-2      # observation noise added to the train Gram matrix
MEAN_CONST = 0.25     # constant prior mean (ConstMean.c)

_INV_L2 = 1.0 / (LENGTHSCALE * LENGTHSCALE)
_INV_2L2 = 0.5 * _INV_L2

_VMEM_LIMIT_BYTES = 40 * 1024 * 1024   # v5e default scoped VMEM (16 MiB) is too small


# ------------------------------ helpers ---------------------------------------

def _cdiv(a, b):
    return -(-a // b)


def _round_up(x, m):
    return ((x + m - 1) // m) * m


def _pick_block(size, target, align, min_blocks=1):
    """Block size: multiple of `align` (or the full dim if size < align), <= size.

    min_blocks=2 caps the block so the axis has at least two grid blocks when
    possible -- lets the 'parallel' row axis shard across v7x's two TensorCores.
    """
    size = max(int(size), 1)
    if size < align:
        return size                       # full (short) dim: allowed by the (8,128) rule
    target = max(align, (int(target) // align) * align)
    blk = min(target, (size // align) * align)
    if min_blocks > 1:
        cap = _round_up(_cdiv(size, min_blocks), align)
        blk = min(blk, cap)
    return max(blk, align)


def _pad_rows(a, rows):
    if rows == a.shape[0]:
        return a
    return jnp.pad(a, ((0, rows - a.shape[0]), (0, 0)))


# ---------------------------- ConstMean kernels --------------------------------

def _const_fill_kernel(c_ref, out_ref):
    # forward(X, 'func') = ones(M) * c  -- emitted lane-dense as (1, M_pad).
    out_ref[...] = jnp.full(out_ref.shape, c_ref[0], dtype=out_ref.dtype)


def _zeros_kernel(out_ref):
    # forward(X, 'grad') = zeros_like(X), one row tile per grid step.
    out_ref[...] = jnp.zeros(out_ref.shape, out_ref.dtype)


def const_mean_func(c, m):
    m_pad = _round_up(max(m, 1), 128)          # lane-dense output (avoids vst.msk)
    out = pl.pallas_call(
        _const_fill_kernel,
        out_shape=jax.ShapeDtypeStruct((1, m_pad), jnp.float32),
        in_specs=[pl.BlockSpec(memory_space=pltpu.MemorySpace.SMEM)],
        out_specs=pl.BlockSpec((1, m_pad), lambda: (0, 0)),
    )(c)
    return out[0, :m]


def const_mean_grad(x):
    # TODO(synk): a bare jnp.zeros_like(x) would let XLA fuse this away entirely; kept as
    # a (row-tiled) Pallas kernel for module fidelity.
    orig_shape = x.shape
    if x.ndim == 0:
        rows, cols = 1, 1
    elif x.ndim == 1:
        rows, cols = 1, int(orig_shape[0])
    else:
        rows = 1
        for s in orig_shape[:-1]:
            rows *= int(s)
        cols = int(orig_shape[-1])
    rows, cols = max(rows, 1), max(cols, 1)
    tr = _pick_block(rows, 1024, 8)
    out = pl.pallas_call(
        _zeros_kernel,
        out_shape=jax.ShapeDtypeStruct((rows, cols), x.dtype),
        grid_spec=pltpu.PrefetchScalarGridSpec(
            num_scalar_prefetch=0,
            grid=(_cdiv(rows, tr),),
            in_specs=[],
            out_specs=pl.BlockSpec((tr, cols), lambda i: (i, 0)),
        ),
    )()
    return out.reshape(orig_shape)


class ConstMeanPallas:
    """Pallas/JAX equivalent of the PyTorch ConstMean module."""

    def __init__(self, c=0.0):
        self.c = jnp.asarray([c], dtype=jnp.float32)

    def forward(self, X, operation='func'):
        if operation == 'func':
            return const_mean_func(self.c, X.shape[0])
        elif operation == 'grad':
            return const_mean_grad(X)
        else:
            raise NotImplementedError(operation + 'is not implemented!')

    __call__ = forward


# ---------------------------- GP Pallas kernels --------------------------------

def _make_gram_kernel(add_noise_diag):
    """One (tm, tn) tile of K = sigma^2 exp(-||x - xt||^2/(2 l^2)) (+ noise*I if asked).

    Inputs are pre-scaled: xt_dist = xt / l^2, sqx = -|x|^2/(2l^2), sqt = -|xt|^2/(2l^2),
    so the exponent is xxt + sqx + sqt (two VPU adds before the EUP exp). The kernel is
    HBM-writeback bound, so fusing the +noise*eye saves a full extra N^2 HBM pass.
    """

    def kernel(x_ref, sqx_ref, xt_dist_ref, sqt_ref, out_ref):
        xxt = jax.lax.dot_general(                       # MXU, contract feature dim
            x_ref[...], xt_dist_ref[...], (((1,), (1,)), ((), ())),
            preferred_element_type=jnp.float32)
        expo = jnp.minimum(xxt + sqx_ref[...] + sqt_ref[...], 0.0)   # keep diag exact
        k = SIGNAL_VAR * jnp.exp(expo)
        if add_noise_diag:
            tm, tn = out_ref.shape
            rows = pl.program_id(0) * tm + jax.lax.broadcasted_iota(jnp.int32, (tm, tn), 0)
            cols = pl.program_id(1) * tn + jax.lax.broadcasted_iota(jnp.int32, (tm, tn), 1)
            k = k + jnp.where(rows == cols, NOISE_VAR, 0.0)
        out_ref[...] = k

    return kernel


def _make_fused_posterior_kernel(d):
    """Fused posterior mean + gradient; output tile (tm, d+1): [:, :d]=grad, [:, d]=mean.

    Main loop per element: 2 adds + exp (EUP) + 1 mul; the reduction over the training
    axis uses a VMEM accumulator and the ones-column trick (w @ [X_train | 1] gives both
    the gradient numerator and rowsum(w) = k @ mu from one MXU op).
    """

    def kernel(x_ref, sqx_ref, xt_dist_ref, xt_aug_ref, mu_ref, sqt_ref, out_ref, acc_ref):
        @pl.when(pl.program_id(1) == 0)
        def _():
            acc_ref[...] = jnp.zeros_like(acc_ref)

        x = x_ref[...]                                   # (tm, d)
        xxt = jax.lax.dot_general(                       # x . (xt / l^2)
            x, xt_dist_ref[...], (((1,), (1,)), ((), ())),
            preferred_element_type=jnp.float32)
        k = jnp.exp(xxt + sqx_ref[...] + sqt_ref[...])   # EUP exp (binding unit)
        w = k * mu_ref[...]                              # mu pre-scaled by SIGNAL_VAR
        acc_ref[...] += jnp.dot(w, xt_aug_ref[...], preferred_element_type=jnp.float32)

        @pl.when(pl.program_id(1) == pl.num_programs(1) - 1)
        def _():
            a = acc_ref[...]                             # (tm, d+1)
            s = a[:, d:d + 1]                            # rowsum(w) = k @ mu
            grad = (a[:, :d] - x * s) * _INV_L2
            mean = MEAN_CONST + s
            out_ref[...] = jnp.concatenate([grad, mean], axis=-1)

    return kernel


# ------------------------------ wrappers --------------------------------------

def gram(x, xt, *, add_noise_diag=False, tm_target=512, tn_target=2048):
    """K(x, xt), tiled (rows x cols), both grid axes parallel (megacore on v7x)."""
    m, d = x.shape
    n, _ = xt.shape
    tm = _pick_block(m, tm_target, 8, min_blocks=2)
    tn = _pick_block(n, tn_target, 128)
    x = x.astype(jnp.float32)
    xt = xt.astype(jnp.float32)
    sqx = (-_INV_2L2) * jnp.sum(x * x, axis=-1, keepdims=True)        # (m, 1)
    xt_dist = xt * _INV_L2                                            # (n, d)
    sqt = ((-_INV_2L2) * jnp.sum(xt * xt, axis=-1))[None, :]          # (1, n)

    return pl.pallas_call(
        _make_gram_kernel(add_noise_diag),
        out_shape=jax.ShapeDtypeStruct((m, n), jnp.float32),          # no pad-then-slice
        grid_spec=pltpu.PrefetchScalarGridSpec(
            num_scalar_prefetch=0,
            grid=(_cdiv(m, tm), _cdiv(n, tn)),                        # ragged edge blocks
            in_specs=[
                pl.BlockSpec((tm, d), lambda i, j: (i, 0)),
                pl.BlockSpec((tm, 1), lambda i, j: (i, 0)),
                pl.BlockSpec((tn, d), lambda i, j: (j, 0)),
                pl.BlockSpec((1, tn), lambda i, j: (0, j)),
            ],
            out_specs=pl.BlockSpec((tm, tn), lambda i, j: (i, j)),
        ),
        compiler_params=pltpu.CompilerParams(
            dimension_semantics=("parallel", "parallel"),
            vmem_limit_bytes=_VMEM_LIMIT_BYTES),
    )(x, sqx, xt_dist, sqt)


def _prep_train_side(xt, mu, *, tn_target=2048):
    """Query-invariant preprocessing (done once, in __init__)."""
    n, d = xt.shape
    tn = _pick_block(n, tn_target, 128)
    n_pad = _round_up(n, tn)                    # reduction axis pre-padded: no edge blocks
    xt_p = _pad_rows(xt.astype(jnp.float32), n_pad)
    xt_aug = jnp.concatenate([xt_p, jnp.ones((n_pad, 1), jnp.float32)], axis=-1)
    xt_dist = xt_p * _INV_L2
    sqt = ((-_INV_2L2) * jnp.sum(xt_p * xt_p, axis=-1))[None, :]      # (1, n_pad)
    mu_row = jnp.zeros((1, n_pad), jnp.float32).at[0, :n].set(
        SIGNAL_VAR * jnp.asarray(mu, jnp.float32).reshape(-1))        # SIGNAL_VAR folded in
    return {"xt_aug": xt_aug, "xt_dist": xt_dist, "sqt": sqt,
            "mu_row": mu_row, "tn": tn, "d": d}


def posterior_mean_and_grad(x, prep, *, tm_target=512):
    """Fused: mean = c + k(x, X_train) @ mu  and  grad = d mean / dx, one kernel pass."""
    m, d = x.shape
    assert d == prep["d"]
    tn = prep["tn"]
    n_pad = prep["xt_aug"].shape[0]
    tm = _pick_block(m, tm_target, 8, min_blocks=2)

    x = x.astype(jnp.float32)
    sqx = (-_INV_2L2) * jnp.sum(x * x, axis=-1, keepdims=True)        # (m, 1)

    out = pl.pallas_call(
        _make_fused_posterior_kernel(d),
        out_shape=jax.ShapeDtypeStruct((m, d + 1), jnp.float32),
        grid_spec=pltpu.PrefetchScalarGridSpec(
            num_scalar_prefetch=0,
            grid=(_cdiv(m, tm), n_pad // tn),          # (rows parallel, N reduction)
            in_specs=[
                pl.BlockSpec((tm, d), lambda i, k: (i, 0)),       # x
                pl.BlockSpec((tm, 1), lambda i, k: (i, 0)),       # sqx (pre-scaled)
                pl.BlockSpec((tn, d), lambda i, k: (k, 0)),       # xt / l^2
                pl.BlockSpec((tn, d + 1), lambda i, k: (k, 0)),   # [xt | 1]
                pl.BlockSpec((1, tn), lambda i, k: (0, k)),       # sigma^2 * mu
                pl.BlockSpec((1, tn), lambda i, k: (0, k)),       # sqt (pre-scaled)
            ],
            out_specs=pl.BlockSpec((tm, d + 1), lambda i, k: (i, 0)),
            scratch_shapes=[pltpu.VMEM((tm, d + 1), jnp.float32)],
        ),
        compiler_params=pltpu.CompilerParams(
            dimension_semantics=("parallel", "arbitrary"),
            vmem_limit_bytes=_VMEM_LIMIT_BYTES),
    )(x, sqx, prep["xt_dist"], prep["xt_aug"], prep["mu_row"], prep["sqt"])

    mean_out = out[:, d]
    grad_out = out[:, :d]
    return mean_out, grad_out


class PosteriorGPPallas:
    """GP posterior with ConstMean prior + RBF kernel (hot paths in Pallas)."""

    def __init__(self, X, Y, *, gram_tm=512, gram_tn=2048, post_tn=2048):
        self.x = jnp.asarray(X, jnp.float32)
        self.prior_mean = ConstMeanPallas(MEAN_CONST)
        # noise diagonal fused into the Gram kernel (no extra full-matrix HBM pass)
        K = gram(self.x, self.x, add_noise_diag=True,
                 tm_target=gram_tm, tn_target=gram_tn)
        resid = jnp.asarray(Y, jnp.float32).reshape(-1) - self.prior_mean(self.x, 'func')
        # TODO(synk): dense solve/Cholesky has no clean Pallas equivalent; done in plain JAX.
        self.mu = jnp.linalg.solve(K, resid)[:, None]     # (N, 1)
        # query-invariant preprocessing hoisted out of the per-query path
        self._prep = _prep_train_side(self.x, self.mu, tn_target=post_tn)

    def mean_and_grad(self, X, *, tm_target=512):
        return posterior_mean_and_grad(jnp.asarray(X, jnp.float32), self._prep,
                                       tm_target=tm_target)

    def mean(self, X, **kw):      # loc(X, op='func')
        return self.mean_and_grad(X, **kw)[0]

    def grad(self, X, **kw):      # loc(X, op='grad')
        return self.mean_and_grad(X, **kw)[1]

    def forward(self, X):
        raise NotImplementedError(
            "Similar to GaussianProcess class, this should return a "
            "MultivariateNormal instance which is not implemented yet")


# ------------------------------ reference -------------------------------------

def _ref_rbf(x, xt):
    d2 = jnp.sum((x[:, None, :] - xt[None, :, :]) ** 2, axis=-1)
    return SIGNAL_VAR * jnp.exp(-d2 / (2.0 * LENGTHSCALE ** 2))


if __name__ == "__main__":
    key = jax.random.PRNGKey(0)
    k1, k2, k3 = jax.random.split(key, 3)

    N, M, D = 200, 24, 4
    X_train = jax.random.normal(k1, (N, D), dtype=jnp.float32)
    Y_train = jax.random.normal(k2, (N,), dtype=jnp.float32)
    X_test = jax.random.normal(k3, (M, D), dtype=jnp.float32)

    # --- ConstMean module semantics ------------------------------------------
    cm = ConstMeanPallas(MEAN_CONST)
    cm_func = jax.block_until_ready(cm(X_test, 'func'))
    cm_grad = jax.block_until_ready(cm(X_test, 'grad'))
    assert cm_func.shape == (M,)
    assert jnp.allclose(cm_func, jnp.ones((M,), jnp.float32) * MEAN_CONST)
    assert cm_grad.shape == X_test.shape and jnp.allclose(cm_grad, 0.0)

    # --- GP posterior (small tile targets to exercise tiled / ragged grids) ---
    gp = PosteriorGPPallas(X_train, Y_train, gram_tm=64, gram_tn=128, post_tn=128)
    mean_out, grad_out = gp.mean_and_grad(X_test, tm_target=8)
    mean_out = jax.block_until_ready(mean_out)            # (M,)
    grad_out = jax.block_until_ready(grad_out)            # (M, D)

    # --- pure-JAX reference ----------------------------------------------------
    K_ref = _ref_rbf(X_train, X_train)
    K_pallas = jax.block_until_ready(gram(X_train, X_train, tm_target=64, tn_target=128))
    assert jnp.allclose(K_pallas, K_ref, atol=1e-4, rtol=1e-4)
    K_noise = jax.block_until_ready(
        gram(X_train, X_train, add_noise_diag=True, tm_target=64, tn_target=128))
    assert jnp.allclose(K_noise, K_ref + NOISE_VAR * jnp.eye(N, dtype=jnp.float32),
                        atol=1e-4, rtol=1e-4)

    mu = gp.mu[:, 0]                                       # same weights for both paths
    Kxs = _ref_rbf(X_test, X_train)
    mean_ref = MEAN_CONST + Kxs @ mu
    diff = X_test[:, None, :] - X_train[None, :, :]        # (M, N, D)
    grad_ref = jnp.einsum("mnd,mn,n->md", -diff / LENGTHSCALE ** 2, Kxs, mu)

    assert jnp.allclose(mean_out, mean_ref, atol=1e-4, rtol=1e-4)
    assert jnp.allclose(grad_out, grad_ref, atol=1e-4, rtol=1e-4)

    print("KERNEL_OK")
</pallas_src>

<mosaic_0001>
module attributes {stable_mosaic.version = 11 : i64} {
  func.func @_const_fill_kernel(%arg0: memref<1xf32, #tpu.memory_space<smem>>, %arg1: memref<1x128xf32, #tpu.memory_space<vmem>>) attributes {dimension_semantics = [], scalar_prefetch = 0 : i64, scratch_operands = 0 : i64, tpu.core_type = #tpu.core_type<tc>} {
    %c0 = arith.constant 0 : index
    %0 = memref.load %arg0[%c0] : memref<1xf32, #tpu.memory_space<smem>>
    %1 = vector.broadcast %0 : f32 to vector<1x128xf32>
    %c0_0 = arith.constant 0 : index
    %c0_1 = arith.constant 0 : index
    %2 = vector.load %arg1[%c0_0, %c0_1] : memref<1x128xf32, #tpu.memory_space<vmem>>, vector<1x128xf32>
    tpu.vector_store %arg1[%c0_0, %c0_1], %1 {strides = array<i32>} : memref<1x128xf32, #tpu.memory_space<vmem>>, vector<1x128xf32>,
    return
  }
}

</mosaic_0001>

<llo_original>
// kernel: tpu_custom_call.1
$region0: #{tpu_custom_call.1}
  #allocation0 [shape = 'u32[]', space=smem, size = 0x4, offset = 0x4, fixed_abs, tag = 'smem constant byte address 0x4 - core index']
  #allocation1 [shape = 'u32[144,128]{1,0:T(1,128)}', space=vmem, size = 0x12000, scoped, tag = 'internal scratch']
  #allocation2 [shape = 'f32[1]{0:T(128)S(6)}', space=smem, size = 0x200, scoped, tag = 'scoped memory for tpu_custom_call.1']
  %s0 = inlined_call_operand.<no memory space> [shape: f32[1], index: 0, kind: input, shape index: {}]
  %s1 = inlined_call_operand.hbm [shape: f32[1,128], index: 1, kind: output, shape index: {}]
  %s2 = sld [smem:[#allocation0]]
  $region14: #{tpu_custom_call.1} parent=0
    _
  %s4 = ssub.s32 1, %s2
  %s5 = scalar_select 0, %s4, %s2
  %6 = sst [smem:[#allocation2]] %s0
  $region1: #{tpu_custom_call.1} parent=0
    #allocation3 [shape = 'u8[512]{0}', space=vmem, size = 0x400, scoped, tag = 'output window, operand 0, single buffered']
    #allocation4 [shape = 's32[1]{0}', space=sflag, size = 0x4, scoped, tag = 'scoped memory for tpu_custom_call.1']
    %7 = vsyncpa [#allocation4], 0
    // Predicated region
    $region2: #{tpu_custom_call.1} parent=1 // pred_check
      _
    $region3: #{tpu_custom_call.1} parent=1 // pred_check_branch
      %9 = sbr.rel (0) target = $region5
    $region4: #{tpu_custom_call.1} parent=1 // pred_region
      _
    $region5: #{tpu_custom_call.1} parent=1 // pred_fallthru
      _
    %s10 = sld [smem:[#allocation2]]
    %v11 = vstv %s10
    %12 = vst [vmem:[#allocation3] sm:$0x1] %v11
    // Predicated region
    $region6: #{tpu_custom_call.1} parent=1 // pred_check
      _
    $region7: #{tpu_custom_call.1} parent=1 // pred_check_branch
      %14 = sbr.rel (0) target = $region9
    $region8: #{tpu_custom_call.1} parent=1 // pred_region
      %s16 = ssub.s32 16, 16
      %17 = vsyncadd [#allocation4], %s16
      %s19 = sshll.u32 [#allocation3], 4
      %s20 = int_to_ptr.vmem [resolvable:$true] %s19
      %22 = dma.vmem_to_hbm [thread:$0]  %s20, 16, %s1, [#allocation4]
    $region9: #{tpu_custom_call.1} parent=1 // pred_fallthru
      _
    // Predicated region
    $region10: #{tpu_custom_call.1} parent=1 // pred_check
      _
    $region11: #{tpu_custom_call.1} parent=1 // pred_check_branch
      %24 = sbr.rel (0) target = $region13
    $region12: #{tpu_custom_call.1} parent=1 // pred_region
      %25 = dma.done [#allocation4], 16
    $region13: #{tpu_custom_call.1} parent=1 // pred_fallthru
      _
    %26 = vsyncpa [#allocation4], 1

</llo_original>
